<compile_context>
chip_gen: v7x
topology: tpu7x:2x2x1
jax: 0.10.0
libtpu: 0.0.40
codegen_flags: <defaults>
</compile_context>

<pallas_src>
import functools

import jax
import jax.numpy as jnp
from jax import lax
from jax.experimental import pallas as pl
from jax.experimental.pallas import tpu as pltpu

_LANES = 128
_MAX_TILE_ROWS = 8192                   # 4 MiB per f32 input block
_DB_INPUT_BUDGET = 24 * 1024 * 1024     # double-buffered input bytes (v7x-safe)


def _round_up(x, m):
    return -(-x // m) * m


def _round_down(x, m):
    return max(m, (x // m) * m)


def _largest_divisor_leq(n, bound):
    bound = max(1, min(n, int(bound)))
    for d in range(bound, 0, -1):
        if n % d == 0:
            return d
    return 1


def _cmp_kernel(*refs, has_key, has_hop, min_diff, nk, rows_blocks,
                row_local_last, tail_lanes, needs_mask, may_overrun):
    it = iter(refs)
    pred_ref = next(it)
    label_ref = next(it)
    key_ref = next(it) if has_key else None
    hop_ref = next(it) if has_hop else None
    sumsq_ref = next(it)
    count_ref = next(it)

    s = pl.program_id(1)            # parallel row-split index (usually extent 1)
    k = pl.program_id(2)            # reduction step within the split
    rb = s * nk + k                 # global row-block index

    delta = (pred_ref[...].astype(jnp.float32)
             - label_ref[...].astype(jnp.float32)
             - jnp.float32(min_diff))
    if has_key:
        delta = delta * jnp.sign(key_ref[...].astype(jnp.float32))
    if has_hop:
        delta = delta * hop_ref[...].astype(jnp.float32)

    neg = (delta < 0.0).astype(jnp.float32)     # count mask (strict <)
    clipped = jnp.minimum(delta, 0.0)           # == delta * (delta < 0)

    @pl.when(k == 0)
    def _():
        sumsq_ref[...] = jnp.zeros_like(sumsq_ref)
        count_ref[...] = jnp.zeros_like(count_ref)

    def accumulate(c, n):
        sumsq_ref[...] += jnp.sum(c * c, axis=1, keepdims=True)
        count_ref[...] += jnp.sum(n, axis=1, keepdims=True)

    if needs_mask:
        last_rb = rows_blocks - 1

        @pl.when(rb < last_rb)          # interior blocks: no mask math at all
        def _():
            accumulate(clipped, neg)

        @pl.when(rb == last_rb)         # ragged tail block: jnp.where the tail
        def _():
            row = lax.broadcasted_iota(jnp.int32, delta.shape, 1)
            lane = lax.broadcasted_iota(jnp.int32, delta.shape, 2)
            valid = (row < row_local_last) | (
                (row == row_local_last) & (lane < tail_lanes))
            accumulate(jnp.where(valid, clipped, 0.0),
                       jnp.where(valid, neg, 0.0))
        # rb > last_rb (clamped duplicate blocks): skipped.
    elif may_overrun:
        @pl.when(rb < rows_blocks)
        def _():
            accumulate(clipped, neg)
    else:
        accumulate(clipped, neg)


def cmp_loss(cls_score, label, cmp_key=None, hop_mask=None,
             reduction='mean', loss_weight=1.0, min_diff=1e-8, scalar=1.0,
             eps=1e-7, max_tile_rows=None):
    """Pallas implementation of CmpLoss.forward (weight=None path)."""
    assert reduction in ('none', 'mean', 'sum')
    # TODO(synk): per-sample `weight` and the original torch.isnan assert are
    # not implemented (weight=None path only).
    eps = min(min_diff, eps)

    B, N, C = cls_score.shape
    M = N * C
    rows = -(-M // _LANES)                    # ceil(M / 128)
    tail_lanes = M - (rows - 1) * _LANES      # valid lanes in the last row
    has_key = cmp_key is not None
    has_hop = hop_mask is not None

    def prep(x):
        if x.dtype == jnp.bool_:
            x = x.astype(jnp.int8)            # stream masks as int8, not i1
        x = x.reshape(B, M)                   # free (row-major) reshape
        if M != rows * _LANES:
            # <=127 zero elements per sample (old version padded whole tiles).
            x = jnp.pad(x, ((0, 0), (0, rows * _LANES - M)))
        return x.reshape(B, rows, _LANES)

    inputs = [prep(cls_score), prep(label)]
    if has_key:
        inputs.append(prep(cmp_key))
    if has_hop:
        inputs.append(prep(hop_mask))

    sum_itemsize = sum(x.dtype.itemsize for x in inputs)
    align = 8 if all(x.dtype.itemsize == 4 for x in inputs) else 32

    # --- tile / packing selection: biggest tiles that keep the double-buffered
    #     input footprint <= ~24 MiB on every TPU generation ---
    cap = _DB_INPUT_BUDGET // (2 * _LANES * sum_itemsize)
    cap = min(_MAX_TILE_ROWS, cap)
    if max_tile_rows is not None:             # test-only knob
        cap = min(cap, int(max_tile_rows))
    cap = _round_down(cap, align)

    if rows <= cap:
        tile_rows = rows                      # whole sample fits in one block
        per_sample_db = 2 * _round_up(rows, 32) * _LANES * sum_itemsize
        bt = _largest_divisor_leq(B, _DB_INPUT_BUDGET // max(1, per_sample_db))
    else:
        tile_rows = cap
        bt = 1
    rows_blocks = -(-rows // tile_rows)

    # v7x has 2 TensorCores: guarantee a parallel axis >= 2 when B == 1.
    if B == 1 and rows_blocks >= 2:
        ns = 2
        nk = -(-rows_blocks // 2)
    else:
        ns = 1
        nk = rows_blocks
    nb = B // bt
    assert ns == 1 or bt == 1

    needs_mask = (rows_blocks * tile_rows != rows) or (tail_lanes != _LANES)
    may_overrun = ns * nk > rows_blocks
    row_local_last = (rows - 1) - (rows_blocks - 1) * tile_rows

    if may_overrun:
        def in_map(b, s, k):
            return (b, jnp.minimum(s * nk + k, rows_blocks - 1), 0)
    else:
        def in_map(b, s, k):
            return (b, s * nk + k, 0)

    def out_map(b, s, k):
        return (b * ns + s, 0, 0)

    in_spec = pl.BlockSpec((bt, tile_rows, _LANES), in_map)
    out_spec = pl.BlockSpec((bt, 1, _LANES), out_map)

    kernel = functools.partial(
        _cmp_kernel, has_key=has_key, has_hop=has_hop, min_diff=min_diff,
        nk=nk, rows_blocks=rows_blocks, row_local_last=row_local_last,
        tail_lanes=tail_lanes, needs_mask=needs_mask, may_overrun=may_overrun)

    # Scoped-VMEM limit: v5e default (16 MiB) is too small for 4 MiB/input
    # double-buffered blocks; stay well below v7x's 64 MiB physical VMEM.
    block_in_bytes = sum(
        bt * _round_up(tile_rows, 32) * _LANES * x.dtype.itemsize for x in inputs)
    vmem_limit = int(min(48 * 2**20, max(16 * 2**20, 2 * block_in_bytes + 8 * 2**20)))

    cost = pl.CostEstimate(
        flops=int((6 + 2 * int(has_key) + 2 * int(has_hop)) * B * M),
        transcendentals=0,
        bytes_accessed=int(sum(x.size * x.dtype.itemsize for x in inputs)
                           + 2 * B * ns * _LANES * 4))

    sumsq_p, count_p = pl.pallas_call(
        kernel,
        out_shape=(jax.ShapeDtypeStruct((B * ns, 1, _LANES), jnp.float32),
                   jax.ShapeDtypeStruct((B * ns, 1, _LANES), jnp.float32)),
        grid_spec=pltpu.PrefetchScalarGridSpec(
            num_scalar_prefetch=0,
            grid=(nb, ns, nk),
            in_specs=[in_spec] * len(inputs),
            out_specs=[out_spec, out_spec],
        ),
        compiler_params=pltpu.CompilerParams(
            dimension_semantics=("parallel", "parallel", "arbitrary"),
            vmem_limit_bytes=vmem_limit),
        cost_estimate=cost,
    )(*inputs)

    # Tiny epilogue in plain JAX: finish lane/split reduction, fold scalar**2.
    sumsq = jnp.sum(sumsq_p.reshape(B, -1), axis=-1) * jnp.float32(scalar) ** 2
    count = jnp.sum(count_p.reshape(B, -1), axis=-1)

    if reduction == 'mean':
        per_sample = sumsq / (count + jnp.float32(eps))
    elif reduction == 'sum':
        per_sample = sumsq
    else:  # 'none': stacked per-row sums then .mean() == sumsq / N per sample
        per_sample = sumsq / jnp.float32(N)

    return jnp.mean(per_sample) * jnp.float32(loss_weight)


def _cmp_loss_ref(cls_score, label, cmp_key=None, hop_mask=None,
                  reduction='mean', loss_weight=1.0, min_diff=1e-8,
                  scalar=1.0, eps=1e-7):
    """Pure-JAX reference for correctness checking."""
    eps = min(min_diff, eps)
    delta = cls_score.astype(jnp.float32) - label.astype(jnp.float32) - min_diff
    if cmp_key is not None:
        delta = delta * jnp.sign(cmp_key.astype(jnp.float32))
    if hop_mask is not None:
        delta = delta * hop_mask.astype(jnp.float32)
    neg = delta < 0.0
    invalid = jnp.where(neg, delta, 0.0) * scalar
    sumsq = jnp.sum(invalid * invalid, axis=(-2, -1))
    count = jnp.sum(neg.astype(jnp.float32), axis=(-2, -1))
    if reduction == 'mean':
        per_sample = sumsq / (count + eps)
    elif reduction == 'sum':
        per_sample = sumsq
    else:
        per_sample = sumsq / cls_score.shape[-2]
    return jnp.mean(per_sample) * loss_weight


if __name__ == "__main__":
    key = jax.random.PRNGKey(0)
    k1, k2, k3, k4 = jax.random.split(key, 4)

    B, N, C = 2, 8, 32
    cls_score = jax.random.normal(k1, (B, N, C), dtype=jnp.float32)
    label = jax.random.normal(k2, (B, N, C), dtype=jnp.float32)
    cmp_key = jax.random.normal(k3, (B, N, C), dtype=jnp.float32)
    hop_mask = (jax.random.uniform(k4, (B, N, C)) > 0.3).astype(jnp.float32)

    def check(got, want, rtol=1e-5, atol=1e-6, name=""):
        got = jax.block_until_ready(got)
        assert jnp.allclose(got, want, rtol=rtol, atol=atol), (name, got, want)

    # 1) default path (2 inputs, batch-packed single block)
    check(cmp_loss(cls_score, label), _cmp_loss_ref(cls_score, label),
          name="default")

    # 2) full path with cmp_key / hop_mask (4 streamed inputs)
    check(cmp_loss(cls_score, label, cmp_key=cmp_key, hop_mask=hop_mask),
          _cmp_loss_ref(cls_score, label, cmp_key=cmp_key, hop_mask=hop_mask),
          name="full")

    # 3) 'sum' reduction
    check(cmp_loss(cls_score, label, cmp_key=cmp_key, reduction='sum'),
          _cmp_loss_ref(cls_score, label, cmp_key=cmp_key, reduction='sum'),
          atol=1e-4, name="sum")

    # 4) 'none' reduction
    check(cmp_loss(cls_score, label, reduction='none'),
          _cmp_loss_ref(cls_score, label, reduction='none'), name="none")

    # 5) Non-128-divisible N*C exercises the lane-tail mask (M = 160)
    csp = jax.random.normal(k1, (2, 8, 20), dtype=jnp.float32)
    lbp = jax.random.normal(k2, (2, 8, 20), dtype=jnp.float32)
    check(cmp_loss(csp, lbp), _cmp_loss_ref(csp, lbp), name="misaligned")

    # 6) Native bf16 streaming (no wrapper-side upcast; cast happens in-kernel)
    cs16 = cls_score.astype(jnp.bfloat16)
    lb16 = label.astype(jnp.bfloat16)
    check(cmp_loss(cs16, lb16), _cmp_loss_ref(cs16, lb16), rtol=1e-4,
          name="bf16")

    # 7) B == 1 with several row blocks: exercises the v7x 'parallel' row split,
    #    the clamped index_map + OOB-block skip and the ragged last-block mask
    #    (max_tile_rows is a test-only knob to hit this path at small shapes).
    cs1 = jax.random.normal(k3, (1, 32, 70), dtype=jnp.float32)
    lb1 = jax.random.normal(k4, (1, 32, 70), dtype=jnp.float32)
    check(cmp_loss(cs1, lb1, max_tile_rows=8), _cmp_loss_ref(cs1, lb1),
          name="split")

    print("KERNEL_OK")
</pallas_src>

<mosaic_0001>
module attributes {stable_mosaic.version = 11 : i64} {
  func.func @_cmp_kernel(%arg0: i32, %arg1: i32, %arg2: i32, %arg3: memref<2x2x128xf32, #tpu.memory_space<vmem>>, %arg4: memref<2x2x128xf32, #tpu.memory_space<vmem>>, %arg5: memref<2x1x128xf32, #tpu.memory_space<vmem>>, %arg6: memref<2x1x128xf32, #tpu.memory_space<vmem>>) attributes {dimension_semantics = [#tpu.dimension_semantics<parallel>, #tpu.dimension_semantics<parallel>, #tpu.dimension_semantics<arbitrary>], iteration_bounds = array<i64: 1, 1, 1>, scalar_prefetch = 0 : i64, scratch_operands = 0 : i64, tpu.core_type = #tpu.core_type<tc>, window_params = [{transform_indices = @transform_0, window_bounds = array<i64: 2, 2, 128>}, {transform_indices = @transform_1, window_bounds = array<i64: 2, 2, 128>}, {transform_indices = @transform_2, window_bounds = array<i64: 2, 1, 128>}, {transform_indices = @transform_3, window_bounds = array<i64: 2, 1, 128>}]} {
    %c0 = arith.constant 0 : index
    %c0_0 = arith.constant 0 : index
    %c0_1 = arith.constant 0 : index
    %0 = vector.load %arg3[%c0, %c0_0, %c0_1] : memref<2x2x128xf32, #tpu.memory_space<vmem>>, vector<2x2x128xf32>
    %c0_2 = arith.constant 0 : index
    %c0_3 = arith.constant 0 : index
    %c0_4 = arith.constant 0 : index
    %1 = vector.load %arg4[%c0_2, %c0_3, %c0_4] : memref<2x2x128xf32, #tpu.memory_space<vmem>>, vector<2x2x128xf32>
    %2 = arith.subf %0, %1 : vector<2x2x128xf32>
    %cst = arith.constant 9.99999993E-9 : f32
    %3 = vector.broadcast %cst : f32 to vector<2x2x128xf32>
    %4 = arith.subf %2, %3 : vector<2x2x128xf32>
    %cst_5 = arith.constant 0.000000e+00 : f32
    %5 = vector.broadcast %cst_5 : f32 to vector<2x2x128xf32>
    %6 = arith.cmpf olt, %4, %5 : vector<2x2x128xf32>
    %7 = arith.extui %6 : vector<2x2x128xi1> to vector<2x2x128xi32>
    %8 = arith.sitofp %7 : vector<2x2x128xi32> to vector<2x2x128xf32>
    %cst_6 = arith.constant 0.000000e+00 : f32
    %9 = vector.broadcast %cst_6 : f32 to vector<2x2x128xf32>
    %10 = arith.minimumf %4, %9 : vector<2x2x128xf32>
    %c0_i32 = arith.constant 0 : i32
    %11 = arith.cmpi eq, %arg2, %c0_i32 : i32
    %12 = arith.extui %11 : i1 to i32
    %c0_i32_7 = arith.constant 0 : i32
    %13 = arith.cmpi ne, %12, %c0_i32_7 : i32
    scf.if %13 {
      %cst_22 = arith.constant 0.000000e+00 : f32
      %25 = vector.broadcast %cst_22 : f32 to vector<2x1x128xf32>
      %c0_23 = arith.constant 0 : index
      %c0_24 = arith.constant 0 : index
      %c0_25 = arith.constant 0 : index
      %26 = vector.load %arg5[%c0_23, %c0_24, %c0_25] : memref<2x1x128xf32, #tpu.memory_space<vmem>>, vector<2x1x128xf32>
      tpu.vector_store %arg5[%c0_23, %c0_24, %c0_25], %25 {strides = array<i32>} : memref<2x1x128xf32, #tpu.memory_space<vmem>>, vector<2x1x128xf32>,
      %cst_26 = arith.constant 0.000000e+00 : f32
      %27 = vector.broadcast %cst_26 : f32 to vector<2x1x128xf32>
      %c0_27 = arith.constant 0 : index
      %c0_28 = arith.constant 0 : index
      %c0_29 = arith.constant 0 : index
      %28 = vector.load %arg6[%c0_27, %c0_28, %c0_29] : memref<2x1x128xf32, #tpu.memory_space<vmem>>, vector<2x1x128xf32>
      tpu.vector_store %arg6[%c0_27, %c0_28, %c0_29], %27 {strides = array<i32>} : memref<2x1x128xf32, #tpu.memory_space<vmem>>, vector<2x1x128xf32>,
    } else {
    }
    %c0_8 = arith.constant 0 : index
    %c0_9 = arith.constant 0 : index
    %c0_10 = arith.constant 0 : index
    %14 = vector.load %arg5[%c0_8, %c0_9, %c0_10] : memref<2x1x128xf32, #tpu.memory_space<vmem>>, vector<2x1x128xf32>
    %15 = arith.mulf %10, %10 : vector<2x2x128xf32>
    %cst_11 = arith.constant dense<0.000000e+00> : vector<2x128xf32>
    %16 = vector.multi_reduction <add>, %15, %cst_11 [1] : vector<2x2x128xf32> to vector<2x128xf32>
    %17 = vector.shape_cast %16 : vector<2x128xf32> to vector<2x1x128xf32>
    %18 = arith.addf %14, %17 : vector<2x1x128xf32>
    %c0_12 = arith.constant 0 : index
    %c0_13 = arith.constant 0 : index
    %c0_14 = arith.constant 0 : index
    %19 = vector.load %arg5[%c0_12, %c0_13, %c0_14] : memref<2x1x128xf32, #tpu.memory_space<vmem>>, vector<2x1x128xf32>
    tpu.vector_store %arg5[%c0_12, %c0_13, %c0_14], %18 {strides = array<i32>} : memref<2x1x128xf32, #tpu.memory_space<vmem>>, vector<2x1x128xf32>,
    %c0_15 = arith.constant 0 : index
    %c0_16 = arith.constant 0 : index
    %c0_17 = arith.constant 0 : index
    %20 = vector.load %arg6[%c0_15, %c0_16, %c0_17] : memref<2x1x128xf32, #tpu.memory_space<vmem>>, vector<2x1x128xf32>
    %cst_18 = arith.constant dense<0.000000e+00> : vector<2x128xf32>
    %21 = vector.multi_reduction <add>, %8, %cst_18 [1] : vector<2x2x128xf32> to vector<2x128xf32>
    %22 = vector.shape_cast %21 : vector<2x128xf32> to vector<2x1x128xf32>
    %23 = arith.addf %20, %22 : vector<2x1x128xf32>
    %c0_19 = arith.constant 0 : index
    %c0_20 = arith.constant 0 : index
    %c0_21 = arith.constant 0 : index
    %24 = vector.load %arg6[%c0_19, %c0_20, %c0_21] : memref<2x1x128xf32, #tpu.memory_space<vmem>>, vector<2x1x128xf32>
    tpu.vector_store %arg6[%c0_19, %c0_20, %c0_21], %23 {strides = array<i32>} : memref<2x1x128xf32, #tpu.memory_space<vmem>>, vector<2x1x128xf32>,
    return
  }
  func.func @transform_0(%arg0: i32, %arg1: i32, %arg2: i32) -> (i32, i32, i32) {
    %c1_i32 = arith.constant 1 : i32
    %0 = arith.muli %arg1, %c1_i32 : i32
    %1 = arith.addi %0, %arg2 : i32
    %c0_i32 = arith.constant 0 : i32
    %c0_i32_0 = arith.constant 0 : i32
    return %arg0, %1, %c0_i32 : i32, i32, i32
  }
  func.func @transform_1(%arg0: i32, %arg1: i32, %arg2: i32) -> (i32, i32, i32) {
    %c1_i32 = arith.constant 1 : i32
    %0 = arith.muli %arg1, %c1_i32 : i32
    %1 = arith.addi %0, %arg2 : i32
    %c0_i32 = arith.constant 0 : i32
    %c0_i32_0 = arith.constant 0 : i32
    return %arg0, %1, %c0_i32 : i32, i32, i32
  }
  func.func @transform_2(%arg0: i32, %arg1: i32, %arg2: i32) -> (i32, i32, i32) {
    %c1_i32 = arith.constant 1 : i32
    %0 = arith.muli %arg0, %c1_i32 : i32
    %1 = arith.addi %0, %arg1 : i32
    %c0_i32 = arith.constant 0 : i32
    %c0_i32_0 = arith.constant 0 : i32
    %c0_i32_1 = arith.constant 0 : i32
    return %1, %c0_i32, %c0_i32_0 : i32, i32, i32
  }
  func.func @transform_3(%arg0: i32, %arg1: i32, %arg2: i32) -> (i32, i32, i32) {
    %c1_i32 = arith.constant 1 : i32
    %0 = arith.muli %arg0, %c1_i32 : i32
    %1 = arith.addi %0, %arg1 : i32
    %c0_i32 = arith.constant 0 : i32
    %c0_i32_0 = arith.constant 0 : i32
    %c0_i32_1 = arith.constant 0 : i32
    return %1, %c0_i32, %c0_i32_0 : i32, i32, i32
  }
}

</mosaic_0001>

<llo_original>
// kernel: tpu_custom_call.1
$region0: #{tpu_custom_call.1}
  #allocation0 [shape = 'u32[]', space=smem, size = 0x4, offset = 0x4, fixed_abs, tag = 'smem constant byte address 0x4 - core index']
  #allocation1 [shape = 'u32[144,128]{1,0:T(1,128)}', space=vmem, size = 0x12000, scoped, tag = 'internal scratch']
  %s0 = inlined_call_operand.hbm [shape: f32[2,2,128], index: 0, kind: input, shape index: {}]
  %s1 = inlined_call_operand.hbm [shape: f32[2,2,128], index: 1, kind: input, shape index: {}]
  %s2 = inlined_call_operand.hbm [shape: f32[2,1,128], index: 2, kind: output, shape index: {0}]
  %s3 = inlined_call_operand.hbm [shape: f32[2,1,128], index: 3, kind: output, shape index: {1}]
  %4 = xla_tuple %s2, %s3
  %s5 = sld [smem:[#allocation0]]
  $region38: #{tpu_custom_call.1} parent=0
    _
  %s7 = ssub.s32 1, %s5
  %s8 = scalar_select 0, %s7, %s5
  $region1: #{tpu_custom_call.1} parent=0
    #allocation2 [shape = 'u8[2048]{0}', space=vmem, size = 0x800, scoped, tag = 'input window, operand 0, single buffered']
    #allocation3 [shape = 's32[1]{0}', space=sflag, size = 0x4, scoped, tag = 'scoped memory for tpu_custom_call.1']
    #allocation4 [shape = 's32[1]{0}', space=sflag, size = 0x4, scoped, tag = 'scoped memory for tpu_custom_call.1']
    #allocation5 [shape = 'u8[2048]{0}', space=vmem, size = 0x800, scoped, tag = 'input window, operand 1, single buffered']
    #allocation6 [shape = 's32[1]{0}', space=sflag, size = 0x4, scoped, tag = 'scoped memory for tpu_custom_call.1']
    #allocation7 [shape = 'u8[1024]{0}', space=vmem, size = 0x400, scoped, tag = 'output window, operand 0, single buffered']
    #allocation8 [shape = 'u8[1024]{0}', space=vmem, size = 0x400, scoped, tag = 'output window, operand 1, single buffered']
    #allocation9 [shape = 's32[1]{0}', space=sflag, size = 0x4, scoped, tag = 'scoped memory for tpu_custom_call.1']
    %9 = vsyncpa [#allocation3], 0
    %10 = vsyncpa [#allocation6], 0
    %11 = vsyncpa [#allocation4], 0
    %12 = vsyncpa [#allocation9], 0
    // Predicated region
    $region2: #{tpu_custom_call.1} parent=1 // pred_check
      _
    $region3: #{tpu_custom_call.1} parent=1 // pred_check_branch
      %14 = sbr.rel (0) target = $region5
    $region4: #{tpu_custom_call.1} parent=1 // pred_region
      %s15 = sadd.s32 0, 0
      %s17 = ssub.s32 64, 64
      %18 = vsyncadd [#allocation3], %s17
      %s19 = smul.addr %s15, 32
      %s20 = scalar_lea.hbm %s0, %s19
      %s21 = sshll.u32 [#allocation2], 4
      %s22 = int_to_ptr.vmem [resolvable:$true] %s21
      %27 = dma.hbm_to_vmem [thread:$0]  %s20, 64, %s22, [#allocation3], 32, 32, 2
    $region5: #{tpu_custom_call.1} parent=1 // pred_fallthru
      _
    // Predicated region
    $region6: #{tpu_custom_call.1} parent=1 // pred_check
      _
    $region7: #{tpu_custom_call.1} parent=1 // pred_check_branch
      %29 = sbr.rel (0) target = $region9
    $region8: #{tpu_custom_call.1} parent=1 // pred_region
      %s30 = sadd.s32 0, 0
      %s32 = ssub.s32 64, 64
      %33 = vsyncadd [#allocation6], %s32
      %s34 = smul.addr %s30, 32
      %s35 = scalar_lea.hbm %s1, %s34
      %s36 = sshll.u32 [#allocation5], 4
      %s37 = int_to_ptr.vmem [resolvable:$true] %s36
      %42 = dma.hbm_to_vmem [thread:$0]  %s35, 64, %s37, [#allocation6], 32, 32, 2
    $region9: #{tpu_custom_call.1} parent=1 // pred_fallthru
      _
    // Predicated region
    $region10: #{tpu_custom_call.1} parent=1 // pred_check
      _
    $region11: #{tpu_custom_call.1} parent=1 // pred_check_branch
      %44 = sbr.rel (0) target = $region13
    $region12: #{tpu_custom_call.1} parent=1 // pred_region
      %45 = dma.done [#allocation3], 64
    $region13: #{tpu_custom_call.1} parent=1 // pred_fallthru
      _
    // Predicated region
    $region14: #{tpu_custom_call.1} parent=1 // pred_check
      _
    $region15: #{tpu_custom_call.1} parent=1 // pred_check_branch
      %47 = sbr.rel (0) target = $region17
    $region16: #{tpu_custom_call.1} parent=1 // pred_region
      %48 = dma.done [#allocation6], 64
    $region17: #{tpu_custom_call.1} parent=1 // pred_fallthru
      _
    %s49 = sadd.s32 0, 0
    %s50 = sadd.s32 0, 0
    %s51 = sadd.s32 0, 0
    %s52 = smul.u32 2, %s51
    %s53 = sadd.s32 0, 0
    %s54 = smul.u32 2, %s53
    %v55 = vld [vmem:[#allocation2] sm:$0x3]
    %v56 = vld [vmem:[#allocation2 + $0x2] sm:$0x3]
    %v57 = vld [vmem:[#allocation5] sm:$0x3]
    %v58 = vld [vmem:[#allocation5 + $0x2] sm:$0x3]
    %v59 = vsub.f32 %v55, %v57
    %v60 = vsub.f32 %v56, %v58
    %v61 = vsub.f32 %v59, 1e-08
    %v62 = vsub.f32 %v60, 1e-08
    %vm63 = vcmp.lt.f32.partialorder %v61, 0.0
    %vm64 = vcmp.lt.f32.partialorder %v62, 0.0
    %v65 = vsel %vm63, 1, 0
    %v66 = vsel %vm64, 1, 0
    %v67 = vcvt.s32.f32 %v65
    %v68 = vcvt.s32.f32 %v66
    %v69 = vmin.f32 %v61, 0.0
    %v70 = vmin.f32 %v62, 0.0
    %p71 = scmp.eq.s32.totalorder 0, 0
    // Predicated region
    $region18: #{tpu_custom_call.1} parent=1 // pred_check
      %p72 = pneg %p71
    $region19: #{tpu_custom_call.1} parent=1 // pred_check_branch
      %74 = sbr.rel (%p72) target = $region21
    $region20: #{tpu_custom_call.1} parent=1 // pred_region
      %75 = vst [vmem:[#allocation7] sm:$0x1] 0.0
      %76 = vst [vmem:[#allocation7 + $0x1] sm:$0x1] 0.0
      %77 = vst [vmem:[#allocation8] sm:$0x1] 0.0
      %78 = vst [vmem:[#allocation8 + $0x1] sm:$0x1] 0.0
    $region21: #{tpu_custom_call.1} parent=1 // pred_fallthru
      _
    %v79 = vld [vmem:[#allocation7] sm:$0x1]
    %v80 = vld [vmem:[#allocation7 + $0x1] sm:$0x1]
    %v81 = vmul.f32 %v69, %v69
    %v82 = vmul.f32 %v70, %v70
    %vm83 = vcmask 1041408
    %v84 = vsel %vm83, %v81, 0.0
    %v85 = vrot.slane %v84, 4
    %v86 = vadd.f32 %v84, %v85
    %v87 = vrot.slane %v86, 2
    %v88 = vadd.f32 %v86, %v87
    %v89 = vrot.slane %v88, 1
    %v90 = vadd.f32 %v88, %v89
    %v91 = vsel %vm83, %v82, 0.0
    %v92 = vrot.slane %v91, 4
    %v93 = vadd.f32 %v91, %v92
    %v94 = vrot.slane %v93, 2
    %v95 = vadd.f32 %v93, %v94
    %v96 = vrot.slane %v95, 1
    %v97 = vadd.f32 %v95, %v96
    %v98 = vadd.f32 %v79, %v90
    %v99 = vadd.f32 %v80, %v97
    %100 = vst [vmem:[#allocation7] sm:$0x1] %v98
    %101 = vst [vmem:[#allocation7 + $0x1] sm:$0x1] %v99
    %v102 = vld [vmem:[#allocation8] sm:$0x1]
    %v103 = vld [vmem:[#allocation8 + $0x1] sm:$0x1]
    %v104 = vsel %vm83, %v67, 0.0
    %v105 = vrot.slane %v104, 4
    %v106 = vadd.f32 %v104, %v105
    %v107 = vrot.slane %v106, 2
    %v108 = vadd.f32 %v106, %v107
    %v109 = vrot.slane %v108, 1
    %v110 = vadd.f32 %v108, %v109
    %v111 = vsel %vm83, %v68, 0.0
    %v112 = vrot.slane %v111, 4
    %v113 = vadd.f32 %v111, %v112
    %v114 = vrot.slane %v113, 2
    %v115 = vadd.f32 %v113, %v114
    %v116 = vrot.slane %v115, 1
    %v117 = vadd.f32 %v115, %v116
    %v118 = vadd.f32 %v102, %v110
    %v119 = vadd.f32 %v103, %v117
    %120 = vst [vmem:[#allocation8] sm:$0x1] %v118
    %121 = vst [vmem:[#allocation8 + $0x1] sm:$0x1] %v119
    // Predicated region
    $region22: #{tpu_custom_call.1} parent=1 // pred_check
      _
    $region23: #{tpu_custom_call.1} parent=1 // pred_check_branch
      %123 = sbr.rel (0) target = $region25
    $region24: #{tpu_custom_call.1} parent=1 // pred_region
      %s124 = sadd.s32 0, 0
      %s125 = smul.u32 2, %s124
      %s127 = ssub.s32 32, 32
      %128 = vsyncadd [#allocation4], %s127
      %s129 = smul.addr %s125, 16
      %s130 = scalar_lea.hbm %s2, %s129
      %s131 = sshll.u32 [#allocation7], 4
      %s132 = int_to_ptr.vmem [resolvable:$true] %s131
      %137 = dma.vmem_to_hbm [thread:$0]  %s132, 32, %s130, [#allocation4], 16, 16, 1
    $region25: #{tpu_custom_call.1} parent=1 // pred_fallthru
      _
    // Predicated region
    $region26: #{tpu_custom_call.1} parent=1 // pred_check
      _
    $region27: #{tpu_custom_call.1} parent=1 // pred_check_branch
      %139 = sbr.rel (0) target = $region29
    $region28: #{tpu_custom_call.1} parent=1 // pred_region
      %s140 = sadd.s32 0, 0
      %s141 = smul.u32 2, %s140
      %s143 = ssub.s32 32, 32
      %144 = vsyncadd [#allocation9], %s143
      %s145 = smul.addr %s141, 16
      %s146 = scalar_lea.hbm %s3, %s145
      %s147 = sshll.u32 [#allocation8], 4
      %s148 = int_to_ptr.vmem [resolvable:$true] %s147
      %153 = dma.vmem_to_hbm [thread:$0]  %s148, 32, %s146, [#allocation9], 16, 16, 1
    $region29: #{tpu_custom_call.1} parent=1 // pred_fallthru
      _
    // Predicated region
    $region30: #{tpu_custom_call.1} parent=1 // pred_check
      _
    $region31: #{tpu_custom_call.1} parent=1 // pred_check_branch
      %155 = sbr.rel (0) target = $region33
    $region32: #{tpu_custom_call.1} parent=1 // pred_region
      %156 = dma.done [#allocation4], 32
    $region33: #{tpu_custom_call.1} parent=1 // pred_fallthru
      _
    // Predicated region
    $region34: #{tpu_custom_call.1} parent=1 // pred_check
      _
    $region35: #{tpu_custom_call.1} parent=1 // pred_check_branch
      %158 = sbr.rel (0) target = $region37
    $region36: #{tpu_custom_call.1} parent=1 // pred_region
      %159 = dma.done [#allocation9], 32
    $region37: #{tpu_custom_call.1} parent=1 // pred_fallthru
      _
    %160 = vsyncpa [#allocation3], 1
    %161 = vsyncpa [#allocation6], 1
    %162 = vsyncpa [#allocation4], 1
    %163 = vsyncpa [#allocation9], 1

</llo_original>
